<compile_context>
chip_gen: v7x
topology: tpu7x:2x2x1
jax: 0.10.0
libtpu: 0.0.40
codegen_flags: <defaults>
</compile_context>

<pallas_src>
import functools

import jax
import jax.numpy as jnp
from jax import lax
from jax.experimental import pallas as pl
from jax.experimental.pallas import tpu as pltpu


def _make_focal_kernel(*, gamma, hw, tl, has_alpha):
    """Kernel over a (1, C, tl) logits tile + (1, 1, tl) target tile."""

    def kernel(*refs):
        if has_alpha:
            x_ref, t_ref, a_ref, out_ref, acc_ref = refs
        else:
            x_ref, t_ref, out_ref, acc_ref = refs

        h_i = pl.program_id(1)

        @pl.when(h_i == 0)
        def _init():
            acc_ref[...] = jnp.zeros_like(acc_ref)

        x = x_ref[0].astype(jnp.float32)      # (C, tl)  classes on sublanes
        t = t_ref[0]                          # (1, tl)  int32

        # log-softmax along the class (sublane) axis, numerically stable.
        m = jnp.max(x, axis=0, keepdims=True)                       # (1, tl)
        lse = m + jnp.log(jnp.sum(jnp.exp(x - m), axis=0, keepdims=True))

        # Target gather via a single bool mask reused for alpha.
        cls = lax.broadcasted_iota(jnp.int32, x.shape, 0)            # (C, tl)
        mask = cls == t                                              # (C, tl)
        xt = jnp.sum(jnp.where(mask, x, 0.0), axis=0, keepdims=True)  # (1, tl)

        logpt = xt - lse                                             # log p_t
        pt = jnp.exp(logpt)                                          # p_t (pre-alpha)

        if has_alpha:
            a = a_ref[...].astype(jnp.float32)                       # (C, 1)
            at = jnp.sum(jnp.where(mask, a, 0.0), axis=0, keepdims=True)
            logpt = logpt * at

        # (1 - pt)**gamma without touching the EUP pow path; clamp for the
        # pt > 1-by-an-ulp case (matters for non-integer gamma).
        omp = jnp.maximum(1.0 - pt, 0.0)
        if gamma == 0:
            w = jnp.ones_like(omp)
        elif gamma == 1:
            w = omp
        elif gamma == 2:
            w = omp * omp
        else:
            w = omp ** gamma

        loss = -w * logpt                                            # (1, tl)

        # Tail mask: lanes past H*W (over-read, no wrapper pad) contribute 0.
        pos = lax.broadcasted_iota(jnp.int32, (1, tl), 1) + h_i * tl
        loss = jnp.where(pos < hw, loss, 0.0)

        acc_ref[...] += jnp.sum(loss, axis=1, keepdims=True)         # (1, 1)

        @pl.when(h_i == pl.num_programs(1) - 1)
        def _finalize():
            out_ref[...] = jnp.broadcast_to(acc_ref[...], out_ref.shape)

    return kernel


def focal_loss(x, target, alpha=None, gamma=2, reduction="mean",
               max_block_bytes=2 << 20):
    """Matches FocalLoss.forward(input, target) from the PyTorch module."""
    if x.ndim > 2:
        n, c = x.shape[0], x.shape[1]
        x3 = x.reshape(n, c, -1)            # NCHW -> (N, C, H*W): free view
    else:
        # 2-D (rows, classes) input: one transpose so samples land on lanes.
        c = x.shape[1]
        x3 = x.T[None]                      # (1, C, rows)
        n = 1
    hw = x3.shape[2]
    t3 = target.reshape(n, 1, hw).astype(jnp.int32)
    n_valid = n * hw

    # Lane tile: multiple of 128, ~max_block_bytes of logits per grid step.
    # Double-buffered VMEM stays a few MiB -> safe under v7x's scoped default.
    itemsize = jnp.dtype(x3.dtype).itemsize
    tl = max(128, (max_block_bytes // (c * itemsize)) // 128 * 128)
    hw_pad = ((hw + 127) // 128) * 128
    tl = min(tl, hw_pad)
    grid = (n, pl.cdiv(hw, tl))

    has_alpha = alpha is not None
    kernel = _make_focal_kernel(gamma=gamma, hw=hw, tl=tl, has_alpha=has_alpha)

    in_specs = [
        pl.BlockSpec((1, c, tl), lambda i, j: (i, 0, j)),   # logits tile
        pl.BlockSpec((1, 1, tl), lambda i, j: (i, 0, j)),   # targets tile
    ]
    inputs = [x3, t3]
    if has_alpha:
        alpha_arr = jnp.asarray(alpha, jnp.float32).reshape(c, 1)
        in_specs.append(pl.BlockSpec((c, 1), lambda i, j: (0, 0)))
        inputs.append(alpha_arr)

    partials = pl.pallas_call(
        kernel,
        out_shape=jax.ShapeDtypeStruct((n, 1, 128), jnp.float32),
        grid_spec=pltpu.PrefetchScalarGridSpec(
            num_scalar_prefetch=0,
            grid=grid,
            in_specs=in_specs,
            out_specs=pl.BlockSpec((1, 1, 128), lambda i, j: (i, 0, 0)),
            scratch_shapes=[pltpu.VMEM((1, 1), jnp.float32)],
        ),
        compiler_params=pltpu.CompilerParams(
            dimension_semantics=("parallel", "arbitrary"),
        ),
    )(*inputs)

    total = jnp.sum(partials[:, 0, 0])      # per-N partial sums -> scalar
    if reduction == "mean":
        return total / jnp.float32(n_valid)
    elif reduction == "sum":
        return total
    else:
        # TODO(synk): reduction='none' needs a per-row (N*H*W,) output; not implemented here.
        raise NotImplementedError("reduction='none' not implemented in the Pallas version")


def _focal_loss_ref(x, target, alpha=None, gamma=2):
    """Plain-JAX reference mirroring the PyTorch module (reduction='mean')."""
    n, c = x.shape[0], x.shape[1]
    x2 = x.reshape(n, c, -1).transpose(0, 2, 1).reshape(-1, c).astype(jnp.float32)
    t2 = target.reshape(-1).astype(jnp.int32)
    logp = jax.nn.log_softmax(x2, axis=1)
    logpt = jnp.take_along_axis(logp, t2[:, None], axis=1)[:, 0]
    pt = jnp.exp(logpt)
    if alpha is not None:
        logpt = logpt * jnp.asarray(alpha, jnp.float32)[t2]
    loss = -((1.0 - pt) ** gamma) * logpt
    return loss.mean()


if __name__ == "__main__":
    key = jax.random.PRNGKey(0)
    kx, kt = jax.random.split(key)

    N, C, H, W = 2, 4, 16, 16
    x = jax.random.normal(kx, (N, C, H, W), dtype=jnp.float32)
    target = jax.random.randint(kt, (N, H, W), 0, C, dtype=jnp.int32)

    out = focal_loss(x, target, alpha=None, gamma=2, reduction="mean")
    out = jax.block_until_ready(out)
    ref = _focal_loss_ref(x, target, alpha=None, gamma=2)
    assert jnp.allclose(out, ref, rtol=1e-5, atol=1e-5), (out, ref)

    # Also exercise the alpha path.
    alpha = jnp.array([0.25, 0.75, 1.0, 0.5], jnp.float32)
    out_a = jax.block_until_ready(focal_loss(x, target, alpha=alpha, gamma=2))
    ref_a = _focal_loss_ref(x, target, alpha=alpha, gamma=2)
    assert jnp.allclose(out_a, ref_a, rtol=1e-5, atol=1e-5), (out_a, ref_a)

    print("KERNEL_OK")
</pallas_src>

<mosaic_0001>
module attributes {stable_mosaic.version = 11 : i64} {
  func.func @kernel(%arg0: i32, %arg1: i32, %arg2: memref<1x4x256xf32, #tpu.memory_space<vmem>>, %arg3: memref<1x1x256xi32, #tpu.memory_space<vmem>>, %arg4: memref<1x1x128xf32, #tpu.memory_space<vmem>>, %arg5: memref<1x1xf32, #tpu.memory_space<vmem>>) attributes {dimension_semantics = [#tpu.dimension_semantics<parallel>, #tpu.dimension_semantics<arbitrary>], iteration_bounds = array<i64: 2, 1>, scalar_prefetch = 0 : i64, scratch_operands = 1 : i64, tpu.core_type = #tpu.core_type<tc>, window_params = [{transform_indices = @transform_0, window_bounds = array<i64: 1, 4, 256>}, {transform_indices = @transform_1, window_bounds = array<i64: 1, 1, 256>}, {transform_indices = @transform_2, window_bounds = array<i64: 1, 1, 128>}]} {
    %c0_i32 = arith.constant 0 : i32
    %0 = arith.cmpi eq, %arg1, %c0_i32 : i32
    %1 = arith.extui %0 : i1 to i32
    %c0_i32_0 = arith.constant 0 : i32
    %2 = arith.cmpi ne, %1, %c0_i32_0 : i32
    scf.if %2 {
      %cst_21 = arith.constant 0.000000e+00 : f32
      %49 = vector.broadcast %cst_21 : f32 to vector<1x1xf32>
      %c0_22 = arith.constant 0 : index
      %c0_23 = arith.constant 0 : index
      %50 = vector.load %arg5[%c0_22, %c0_23] : memref<1x1xf32, #tpu.memory_space<vmem>>, vector<1x1xf32>
      tpu.vector_store %arg5[%c0_22, %c0_23], %49 {strides = array<i32>} : memref<1x1xf32, #tpu.memory_space<vmem>>, vector<1x1xf32>,
    } else {
    }
    %c0 = arith.constant 0 : index
    %c0_1 = arith.constant 0 : index
    %c0_2 = arith.constant 0 : index
    %3 = vector.load %arg2[%c0, %c0_1, %c0_2] : memref<1x4x256xf32, #tpu.memory_space<vmem>>, vector<1x4x256xf32>
    %4 = vector.shape_cast %3 : vector<1x4x256xf32> to vector<4x256xf32>
    %c0_3 = arith.constant 0 : index
    %c0_4 = arith.constant 0 : index
    %c0_5 = arith.constant 0 : index
    %5 = vector.load %arg3[%c0_3, %c0_4, %c0_5] : memref<1x1x256xi32, #tpu.memory_space<vmem>>, vector<1x1x256xi32>
    %6 = vector.shape_cast %5 : vector<1x1x256xi32> to vector<1x256xi32>
    %cst = arith.constant dense<0xFF800000> : vector<256xf32>
    %7 = vector.multi_reduction <maximumf>, %4, %cst [0] : vector<4x256xf32> to vector<256xf32>
    %8 = vector.shape_cast %7 : vector<256xf32> to vector<1x256xf32>
    %9 = vector.broadcast %8 : vector<1x256xf32> to vector<4x256xf32>
    %10 = arith.subf %4, %9 : vector<4x256xf32>
    %11 = math.exp %10 : vector<4x256xf32>
    %cst_6 = arith.constant dense<0.000000e+00> : vector<256xf32>
    %12 = vector.multi_reduction <add>, %11, %cst_6 [0] : vector<4x256xf32> to vector<256xf32>
    %13 = vector.shape_cast %12 : vector<256xf32> to vector<1x256xf32>
    %14 = math.log %13 : vector<1x256xf32>
    %15 = arith.addf %8, %14 : vector<1x256xf32>
    %16 = tpu.iota {dimensions = array<i32: 0>} : vector<4x256xi32>
    %17 = vector.broadcast %6 : vector<1x256xi32> to vector<4x256xi32>
    %18 = arith.cmpi eq, %16, %17 : vector<4x256xi32>
    %cst_7 = arith.constant 0.000000e+00 : f32
    %19 = vector.broadcast %cst_7 : f32 to vector<4x256xf32>
    %20 = arith.select %18, %4, %19 : vector<4x256xi1>, vector<4x256xf32>
    %cst_8 = arith.constant dense<0.000000e+00> : vector<256xf32>
    %21 = vector.multi_reduction <add>, %20, %cst_8 [0] : vector<4x256xf32> to vector<256xf32>
    %22 = vector.shape_cast %21 : vector<256xf32> to vector<1x256xf32>
    %23 = arith.subf %22, %15 : vector<1x256xf32>
    %24 = math.exp %23 : vector<1x256xf32>
    %cst_9 = arith.constant 1.000000e+00 : f32
    %25 = vector.broadcast %cst_9 : f32 to vector<1x256xf32>
    %26 = arith.subf %25, %24 : vector<1x256xf32>
    %cst_10 = arith.constant 0.000000e+00 : f32
    %27 = vector.broadcast %cst_10 : f32 to vector<1x256xf32>
    %28 = arith.maximumf %26, %27 : vector<1x256xf32>
    %29 = arith.mulf %28, %28 : vector<1x256xf32>
    %cst_11 = arith.constant 0.000000e+00 : f32
    %30 = vector.broadcast %cst_11 : f32 to vector<1x256xf32>
    %31 = arith.subf %30, %29 : vector<1x256xf32>
    %32 = arith.mulf %31, %23 : vector<1x256xf32>
    %33 = tpu.iota {dimensions = array<i32: 1>} : vector<1x256xi32>
    %c256_i32 = arith.constant 256 : i32
    %34 = arith.muli %arg1, %c256_i32 : i32
    %35 = vector.broadcast %34 : i32 to vector<1x256xi32>
    %36 = arith.addi %33, %35 : vector<1x256xi32>
    %c256_i32_12 = arith.constant 256 : i32
    %37 = vector.broadcast %c256_i32_12 : i32 to vector<1x256xi32>
    %38 = arith.cmpi slt, %36, %37 : vector<1x256xi32>
    %cst_13 = arith.constant 0.000000e+00 : f32
    %39 = vector.broadcast %cst_13 : f32 to vector<1x256xf32>
    %40 = arith.select %38, %32, %39 : vector<1x256xi1>, vector<1x256xf32>
    %c0_14 = arith.constant 0 : index
    %c0_15 = arith.constant 0 : index
    %41 = vector.load %arg5[%c0_14, %c0_15] : memref<1x1xf32, #tpu.memory_space<vmem>>, vector<1x1xf32>
    %cst_16 = arith.constant dense<0.000000e+00> : vector<1xf32>
    %42 = vector.multi_reduction <add>, %40, %cst_16 [1] : vector<1x256xf32> to vector<1xf32>
    %43 = vector.shape_cast %42 : vector<1xf32> to vector<1x1xf32>
    %44 = arith.addf %41, %43 : vector<1x1xf32>
    %c0_17 = arith.constant 0 : index
    %c0_18 = arith.constant 0 : index
    %45 = vector.load %arg5[%c0_17, %c0_18] : memref<1x1xf32, #tpu.memory_space<vmem>>, vector<1x1xf32>
    tpu.vector_store %arg5[%c0_17, %c0_18], %44 {strides = array<i32>} : memref<1x1xf32, #tpu.memory_space<vmem>>, vector<1x1xf32>,
    %c0_i32_19 = arith.constant 0 : i32
    %46 = arith.cmpi eq, %arg1, %c0_i32_19 : i32
    %47 = arith.extui %46 : i1 to i32
    %c0_i32_20 = arith.constant 0 : i32
    %48 = arith.cmpi ne, %47, %c0_i32_20 : i32
    scf.if %48 {
      %c0_21 = arith.constant 0 : index
      %c0_22 = arith.constant 0 : index
      %49 = vector.load %arg5[%c0_21, %c0_22] : memref<1x1xf32, #tpu.memory_space<vmem>>, vector<1x1xf32>
      %50 = vector.shape_cast %49 : vector<1x1xf32> to vector<1x1x1xf32>
      %51 = vector.broadcast %50 : vector<1x1x1xf32> to vector<1x1x128xf32>
      %c0_23 = arith.constant 0 : index
      %c0_24 = arith.constant 0 : index
      %c0_25 = arith.constant 0 : index
      %52 = vector.load %arg4[%c0_23, %c0_24, %c0_25] : memref<1x1x128xf32, #tpu.memory_space<vmem>>, vector<1x1x128xf32>
      tpu.vector_store %arg4[%c0_23, %c0_24, %c0_25], %51 {strides = array<i32>} : memref<1x1x128xf32, #tpu.memory_space<vmem>>, vector<1x1x128xf32>,
    } else {
    }
    return
  }
  func.func @transform_0(%arg0: i32, %arg1: i32) -> (i32, i32, i32) {
    %c0_i32 = arith.constant 0 : i32
    %c0_i32_0 = arith.constant 0 : i32
    return %arg0, %c0_i32, %arg1 : i32, i32, i32
  }
  func.func @transform_1(%arg0: i32, %arg1: i32) -> (i32, i32, i32) {
    %c0_i32 = arith.constant 0 : i32
    %c0_i32_0 = arith.constant 0 : i32
    return %arg0, %c0_i32, %arg1 : i32, i32, i32
  }
  func.func @transform_2(%arg0: i32, %arg1: i32) -> (i32, i32, i32) {
    %c0_i32 = arith.constant 0 : i32
    %c0_i32_0 = arith.constant 0 : i32
    %c0_i32_1 = arith.constant 0 : i32
    return %arg0, %c0_i32, %c0_i32_0 : i32, i32, i32
  }
}

</mosaic_0001>

<llo_original>
// kernel: tpu_custom_call.1
$region0: #{tpu_custom_call.1}
  #allocation0 [shape = 'u32[]', space=smem, size = 0x4, offset = 0x4, fixed_abs, tag = 'smem constant byte address 0x4 - core index']
  #allocation1 [shape = 'u32[144,128]{1,0:T(1,128)}', space=vmem, size = 0x12000, scoped, tag = 'internal scratch']
  #allocation2 [shape = 'f32[1,1]{1,0:T(1,128)}', space=vmem, size = 0x200, scoped, tag = 'scratch operand']
  %s0 = inlined_call_operand.hbm [shape: f32[2,4,256], index: 0, kind: input, shape index: {}]
  %s1 = inlined_call_operand.hbm [shape: s32[2,1,256], index: 1, kind: input, shape index: {}]
  %s2 = inlined_call_operand.hbm [shape: f32[2,1,128], index: 2, kind: output, shape index: {}]
  %s3 = sld [smem:[#allocation0]]
  $region57: #{tpu_custom_call.1} parent=0
    _
  %s5 = ssub.s32 1, %s3
  %s6 = scalar_select 0, %s5, %s3
  $region1: #{tpu_custom_call.1} parent=0
    #allocation3 [shape = 'u8[8192]{0}', space=vmem, size = 0x2000, scoped, tag = 'input window, operand 0']
    #allocation4 [shape = 's32[2]{0}', space=sflag, size = 0x8, scoped, tag = 'scoped memory for tpu_custom_call.1']
    #allocation5 [shape = 's32[2]{0}', space=sflag, size = 0x8, scoped, tag = 'scoped memory for tpu_custom_call.1']
    #allocation6 [shape = 'u8[2048]{0}', space=vmem, size = 0x800, scoped, tag = 'input window, operand 1']
    #allocation7 [shape = 's32[2]{0}', space=sflag, size = 0x8, scoped, tag = 'scoped memory for tpu_custom_call.1']
    #allocation8 [shape = 'u8[1024]{0}', space=vmem, size = 0x400, scoped, tag = 'output window, operand 0']
    %7 = vsyncpa [#allocation4], 0
    %s8 = scalar_lea.sflag [#allocation4], 1
    %9 = vsyncpa %s8, 0
    %10 = vsyncpa [#allocation7], 0
    %s11 = scalar_lea.sflag [#allocation7], 1
    %12 = vsyncpa %s11, 0
    %13 = vsyncpa [#allocation5], 0
    %s14 = scalar_lea.sflag [#allocation5], 1
    %15 = vsyncpa %s14, 0
    loop: start=0, step=1, limit=4
    $region2: #{tpu_custom_call.1} parent=1 // loop_pre_header
      _
    $region3: #{tpu_custom_call.1} parent=1 // loop_header
      %s17 = sphi 0, %s21
      %p18 = scmp.ge.s32.totalorder %s17, 4
      %s24 = sphi 0, %s36
      %s25 = sphi 0, %s32
      %s26 = sphi 0, %s24
      %s27 = sphi 0, %s25
      %s28 = sphi 0, %s26
      %s29 = sphi 0, %s27
      %s41 = sphi 0, %s43
      %s44 = sphi 0, %s41
      %s45 = sphi 0, %s44
      %s61 = sphi 0, %s45
      %s69 = sphi 0, %s71
      %s72 = sphi 0, %s69
      %s73 = sphi 0, %s72
      %s89 = sphi 0, %s73
      %s95 = sphi 0, %s97
      %s98 = sphi 0, %s95
      %s99 = sphi 0, %s98
      %s115 = sphi 0, %s99
    $region4: #{tpu_custom_call.1} parent=1 // loop_header_branch
      %20 = sbr.rel (%p18) target = $region8
    $region5: #{tpu_custom_call.1} parent=1 // loop_body
      %s22 = ssub.s32 %s17, 1
      %s23 = ssub.s32 %s17, 2
      %s30 = sadd.s32 1, %s25
      %p31 = scmp.ge.s32.totalorder %s30, 1
      %s32 = scalar_select %p31, 0, %s30
      %s33 = sadd.s32 1, %s24
      %s34 = scalar_select %p31, %s33, %s24
      %p35 = scmp.ge.s32.totalorder %s34, 2
      %s36 = scalar_select %p35, 0, %s34
      %s37 = ssub.s32 %s24, %s36
      %s38 = ssub.s32 %s25, %s32
      %s39 = sor.u32 %s37, %s38
      %p40 = scmp.eq.s32.totalorder %s39, 0
      %s42 = sadd.s32 %s41, 1
      %s43 = scalar_select %p40, %s41, %s42
      %p46 = pneg %p40
      %p47 = scmp.eq.s32.totalorder %s17, 1
      %p48 = por %p46, %p47
      %p49 = scmp.ne.s32.totalorder %s41, %s44
      %p50 = scmp.eq.s32.totalorder %s17, 0
      %p51 = por %p49, %p50
      %p52 = scmp.ne.s32.totalorder %s41, %s44
      %p53 = scmp.eq.s32.totalorder %s22, 1
      %p54 = por %p52, %p53
      %p55 = scmp.ne.s32.totalorder %s44, %s45
      %p56 = scmp.eq.s32.totalorder %s22, 0
      %p57 = por %p55, %p56
      %p58 = scmp.ne.s32.totalorder %s44, %s45
      %p59 = scmp.eq.s32.totalorder %s23, 1
      %p60 = por %p58, %p59
      %p62 = scmp.ne.s32.totalorder %s45, %s61
      %p63 = scmp.eq.s32.totalorder %s23, 0
      %p64 = por %p62, %p63
      %s65 = ssub.s32 %s24, %s36
      %s66 = ssub.s32 %s25, %s32
      %s67 = sor.u32 %s65, %s66
      %p68 = scmp.eq.s32.totalorder %s67, 0
      %s70 = sadd.s32 %s69, 1
      %s71 = scalar_select %p68, %s69, %s70
      %p74 = pneg %p68
      %p75 = scmp.eq.s32.totalorder %s17, 1
      %p76 = por %p74, %p75
      %p77 = scmp.ne.s32.totalorder %s69, %s72
      %p78 = scmp.eq.s32.totalorder %s17, 0
      %p79 = por %p77, %p78
      %p80 = scmp.ne.s32.totalorder %s69, %s72
      %p81 = scmp.eq.s32.totalorder %s22, 1
      %p82 = por %p80, %p81
      %p83 = scmp.ne.s32.totalorder %s72, %s73
      %p84 = scmp.eq.s32.totalorder %s22, 0
      %p85 = por %p83, %p84
      %p86 = scmp.ne.s32.totalorder %s72, %s73
      %p87 = scmp.eq.s32.totalorder %s23, 1
      %p88 = por %p86, %p87
      %p90 = scmp.ne.s32.totalorder %s73, %s89
      %p91 = scmp.eq.s32.totalorder %s23, 0
      %p92 = por %p90, %p91
      %s93 = ssub.s32 %s24, %s36
      %p94 = scmp.eq.s32.totalorder %s93, 0
      %s96 = sadd.s32 %s95, 1
      %s97 = scalar_select %p94, %s95, %s96
      %p100 = pneg %p94
      %p101 = scmp.eq.s32.totalorder %s17, 1
      %p102 = por %p100, %p101
      %p103 = scmp.ne.s32.totalorder %s95, %s98
      %p104 = scmp.eq.s32.totalorder %s17, 0
      %p105 = por %p103, %p104
      %p106 = scmp.ne.s32.totalorder %s95, %s98
      %p107 = scmp.eq.s32.totalorder %s22, 1
      %p108 = por %p106, %p107
      %p109 = scmp.ne.s32.totalorder %s98, %s99
      %p110 = scmp.eq.s32.totalorder %s22, 0
      %p111 = por %p109, %p110
      %p112 = scmp.ne.s32.totalorder %s98, %s99
      %p113 = scmp.eq.s32.totalorder %s23, 1
      %p114 = por %p112, %p113
      %p116 = scmp.ne.s32.totalorder %s99, %s115
      %p117 = scmp.eq.s32.totalorder %s23, 0
      %p118 = por %p116, %p117
      %p119 = scmp.le.s32.totalorder 1, %s17
      %p120 = scmp.lt.s32.totalorder %s17, 3
      %p121 = pnand %p119, %p120
      %p122 = pneg %p121
      // Predicated region
      $region9: #{tpu_custom_call.1} parent=5 // pred_check
        _
      $region10: #{tpu_custom_call.1} parent=5 // pred_check_branch
        %124 = sbr.rel (%p121) target = $region12
      $region11: #{tpu_custom_call.1} parent=5 // pred_region
        %s125 = ssub.s32 %s17, 1
      $region12: #{tpu_custom_call.1} parent=5 // pred_fallthru
        _
      %p126 = scmp.lt.s32.totalorder %s17, 2
      // Predicated region
      $region13: #{tpu_custom_call.1} parent=5 // pred_check
        %p127 = pneg %p126
      $region14: #{tpu_custom_call.1} parent=5 // pred_check_branch
        %129 = sbr.rel (%p127) target = $region16
      $region15: #{tpu_custom_call.1} parent=5 // pred_region
        // Predicated region
        $region17: #{tpu_custom_call.1} parent=15 // pred_check
          %p130 = pneg %p51
        $region18: #{tpu_custom_call.1} parent=15 // pred_check_branch
          %132 = sbr.rel (%p130) target = $region20
        $region19: #{tpu_custom_call.1} parent=15 // pred_region
          %s133 = sand.u32 %s41, 1
          %s134 = scalar_lea.sflag [#allocation4], %s133
          %s135 = sand.u32 %s41, 1
          %s136 = smul.addr %s135, 8
          %s137 = scalar_lea.vmem [#allocation3], %s136
          %s138 = smul.u32 2, %s25
          %s140 = ssub.s32 128, 128
          %141 = vsyncadd %s134, %s140
          %s142 = smul.addr %s24, 2
          %s143 = sadd.s32 %s138, %s142
          %s144 = smul.addr %s143, 64
          %s145 = scalar_lea.hbm %s0, %s144
          %s147 = sshll.u32 %s137, 4
          %s148 = int_to_ptr.vmem [resolvable:$true] %s147
          %150 = dma.hbm_to_vmem [thread:$0]  %s145, 128, %s148, %s134
        $region20: #{tpu_custom_call.1} parent=15 // pred_fallthru
          _
        // Predicated region
        $region21: #{tpu_custom_call.1} parent=15 // pred_check
          %p151 = pneg %p79
        $region22: #{tpu_custom_call.1} parent=15 // pred_check_branch
          %153 = sbr.rel (%p151) target = $region24
        $region23: #{tpu_custom_call.1} parent=15 // pred_region
          %s154 = sand.u32 %s69, 1
          %s155 = scalar_lea.sflag [#allocation7], %s154
          %s156 = sand.u32 %s69, 1
          %s157 = smul.addr %s156, 2
          %s158 = scalar_lea.vmem [#allocation6], %s157
          %s159 = smul.u32 2, %s25
          %s161 = ssub.s32 32, 32
          %162 = vsyncadd %s155, %s161
          %s163 = smul.addr %s24, 2
          %s164 = sadd.s32 %s159, %s163
          %s165 = smul.addr %s164, 16
          %s166 = scalar_lea.hbm %s1, %s165
          %s168 = sshll.u32 %s158, 4
          %s169 = int_to_ptr.vmem [resolvable:$true] %s168
          %171 = dma.hbm_to_vmem [thread:$0]  %s166, 32, %s169, %s155
        $region24: #{tpu_custom_call.1} parent=15 // pred_fallthru
          _
      $region16: #{tpu_custom_call.1} parent=5 // pred_fallthru
        _
      %p172 = scmp.le.s32.totalorder 1, %s17
      %p173 = scmp.lt.s32.totalorder %s17, 3
      %p174 = pnand %p172, %p173
      %p175 = pneg %p174
      // Predicated region
      $region25: #{tpu_custom_call.1} parent=5 // pred_check
        _
      $region26: #{tpu_custom_call.1} parent=5 // pred_check_branch
        %177 = sbr.rel (%p174) target = $region28
      $region27: #{tpu_custom_call.1} parent=5 // pred_region
        %s178 = ssub.s32 %s17, 1
        %s179 = sand.u32 %s44, 1
        %s180 = scalar_lea.sflag [#allocation4], %s179
        %s181 = sand.u32 %s44, 1
        %s182 = smul.addr %s181, 8
        %s183 = scalar_lea.vmem [#allocation3], %s182
        // Predicated region
        $region29: #{tpu_custom_call.1} parent=27 // pred_check
          %p184 = pneg %p57
        $region30: #{tpu_custom_call.1} parent=27 // pred_check_branch
          %186 = sbr.rel (%p184) target = $region32
        $region31: #{tpu_custom_call.1} parent=27 // pred_region
          %187 = dma.done %s180, 128
        $region32: #{tpu_custom_call.1} parent=27 // pred_fallthru
          _
        %s188 = sand.u32 %s72, 1
        %s189 = scalar_lea.sflag [#allocation7], %s188
        %s190 = sand.u32 %s72, 1
        %s191 = smul.addr %s190, 2
        %s192 = scalar_lea.vmem [#allocation6], %s191
        // Predicated region
        $region33: #{tpu_custom_call.1} parent=27 // pred_check
          %p193 = pneg %p85
        $region34: #{tpu_custom_call.1} parent=27 // pred_check_branch
          %195 = sbr.rel (%p193) target = $region36
        $region35: #{tpu_custom_call.1} parent=27 // pred_region
          %196 = dma.done %s189, 32
        $region36: #{tpu_custom_call.1} parent=27 // pred_fallthru
          _
        %s197 = sand.u32 %s44, 1
        %s198 = scalar_lea.sflag [#allocation4], %s197
        %s199 = sand.u32 %s44, 1
        %s200 = smul.addr %s199, 8
        %s201 = scalar_lea.vmem [#allocation3], %s200
        %p202 = pneg %p57
        %p203 = pneg %p54
        %s204 = sand.u32 %s72, 1
        %s205 = scalar_lea.sflag [#allocation7], %s204
        %s206 = sand.u32 %s72, 1
        %s207 = smul.addr %s206, 2
        %s208 = scalar_lea.vmem [#allocation6], %s207
        %p209 = pneg %p85
        %p210 = pneg %p82
        %p211 = pneg %p111
        %p212 = pneg %p108
        %s213 = sand.u32 %s98, 1
        %s214 = scalar_lea.sflag [#allocation5], %s213
        %s215 = sand.u32 %s98, 1
        %s216 = scalar_lea.vmem [#allocation8], %s215
        %s217 = smul.u32 2, %s27
        %s218 = smul.u32 2, %s27
        %p219 = scmp.eq.s32.totalorder %s27, 0
        // Predicated region
        $region37: #{tpu_custom_call.1} parent=27 // pred_check
          %p220 = pneg %p219
        $region38: #{tpu_custom_call.1} parent=27 // pred_check_branch
          %222 = sbr.rel (%p220) target = $region40
        $region39: #{tpu_custom_call.1} parent=27 // pred_region
          %vm223 = vcmask 0
          %224 = vst.msk [vmem:[#allocation2] sm:$0x1] %vm223, 0.0
        $region40: #{tpu_custom_call.1} parent=27 // pred_fallthru
          _
        %v225 = vld [vmem:[%s183] sm:$0xff]
        %v226 = vld [vmem:[%s192] sm:$0x3]
        %v228 = vcombine.high %v225, %v225
        %vm230 = vcmask 1043456
        %v231 = vsel %vm230, %v225, -inf
        %v232 = vrot.slane %v231, 4
        %v233 = vmax.f32 %v231, %v232
        %v234 = vrot.slane %v233, 2
        %v235 = vmax.f32 %v233, %v234
        %v236 = vrot.slane %v235, 1
        %v237 = vmax.f32 %v235, %v236
        %v238 = vsel %vm230, %v228, -inf
        %v239 = vrot.slane %v238, 4
        %v240 = vmax.f32 %v238, %v239
        %v241 = vrot.slane %v240, 2
        %v242 = vmax.f32 %v240, %v241
        %v243 = vrot.slane %v242, 1
        %v244 = vmax.f32 %v242, %v243
        %v247 = vcombine.low %v237, %v244
        %v249 = vsub.f32 %v225, %v247
        %v250 = vmul.f32 %v249, 1.442695
        %v251 = vpow.pop %v250
        %v253 = vcombine.high %v251, %v251
        %v255 = vsel %vm230, %v251, 0.0
        %v256 = vrot.slane %v255, 4
        %v257 = vadd.f32 %v255, %v256
        %v258 = vrot.slane %v257, 2
        %v259 = vadd.f32 %v257, %v258
        %v260 = vrot.slane %v259, 1
        %v261 = vadd.f32 %v259, %v260
        %v262 = vsel %vm230, %v253, 0.0
        %v263 = vrot.slane %v262, 4
        %v264 = vadd.f32 %v262, %v263
        %v265 = vrot.slane %v264, 2
        %v266 = vadd.f32 %v264, %v265
        %v267 = vrot.slane %v266, 1
        %v268 = vadd.f32 %v266, %v267
        %v269 = vlog2.pop %v261
        %v270 = vmul.f32 %v269, 0.6931472
        %v271 = vlog2.pop %v268
        %v272 = vmul.f32 %v271, 0.6931472
        %v273 = vadd.f32 %v237, %v270
        %v274 = vadd.f32 %v244, %v272
        %v275 = vlaneseq
        %v276 = vshrl.u32 %v275, 7
        %v277 = vlaneseq
        %v278 = vshrl.u32 %v277, 7
        %v279 = vsub.s32 0, %v278
        %v280 = vrot.slane %v226, %v279
        %v281 = vlaneseq
        %v282 = vshrl.u32 %v281, 7
        %v283 = vsub.s32 1, %v282
        %v284 = vrot.slane %v226, %v283
        %vm285 = vcmp.eq.s32.totalorder %v276, %v280
        %vm286 = vcmp.eq.s32.totalorder %v276, %v284
        %v287 = vsel %vm285, %v225, 0.0
        %v288 = vsel %vm286, %v228, 0.0
        %v289 = vsel %vm230, %v287, 0.0
        %v290 = vrot.slane %v289, 4
        %v291 = vadd.f32 %v289, %v290
        %v292 = vrot.slane %v291, 2
        %v293 = vadd.f32 %v291, %v292
        %v294 = vrot.slane %v293, 1
        %v295 = vadd.f32 %v293, %v294
        %v296 = vsel %vm230, %v288, 0.0
        %v297 = vrot.slane %v296, 4
        %v298 = vadd.f32 %v296, %v297
        %v299 = vrot.slane %v298, 2
        %v300 = vadd.f32 %v298, %v299
        %v301 = vrot.slane %v300, 1
        %v302 = vadd.f32 %v300, %v301
        %v303 = vsub.f32 %v295, %v273
        %v304 = vsub.f32 %v302, %v274
        %v305 = vmul.f32 %v303, 1.442695
        %v306 = vpow.pop %v305
        %v307 = vmul.f32 %v304, 1.442695
        %v308 = vpow.pop %v307
        %v309 = vsub.f32 1.0, %v306
        %v310 = vsub.f32 1.0, %v308
        %v311 = vmax.f32 %v309, 0.0
        %v312 = vmax.f32 %v310, 0.0
        %v313 = vmul.f32 %v311, %v311
        %v314 = vmul.f32 %v312, %v312
        %v315 = vsub.f32 0.0, %v313
        %v316 = vsub.f32 0.0, %v314
        %v317 = vmul.f32 %v315, %v303
        %v318 = vmul.f32 %v316, %v304
        %v319 = vlaneseq
        %v320 = vand.u32 %v319, 127
        %v321 = vadd.s32 %v320, 128
        %s322 = smul.u32 %s27, 256
        %v323 = vstv %s322
        %v324 = vadd.s32 %v320, %v323
        %v325 = vadd.s32 %v321, %v323
        %vm326 = vcmp.lt.s32.totalorder %v324, 256
        %vm327 = vcmp.lt.s32.totalorder %v325, 256
        %v328 = vsel %vm326, %v317, 0.0
        %v329 = vsel %vm327, %v318, 0.0
        %v330 = vld [vmem:[#allocation2] sm:$0x1]
        %v331 = vadd.f32 %v328, %v329
        %332 = vadd.xlane.f32.xlu0 %v331
        %v333 = vpop.xlane.xlu0 %332
        %v334 = vadd.f32 %v330, %v333
        %vm335 = vcmask 0
        %336 = vst.msk [vmem:[#allocation2] sm:$0x1] %vm335, %v334
        // Predicated region
        $region41: #{tpu_custom_call.1} parent=27 // pred_check
          %p337 = pneg %p219
        $region42: #{tpu_custom_call.1} parent=27 // pred_check_branch
          %339 = sbr.rel (%p337) target = $region44
        $region43: #{tpu_custom_call.1} parent=27 // pred_region
          %v340 = vld [vmem:[#allocation2] sm:$0x1]
          %342 = vset.pattern.permute.xlu0 0
          %343 = vperm.xlu0 %342, %v340
          %v344 = vpop.permute.xlu0 %343
          %v346 = vlaneseq
          %v347 = vshrl.u32 %v346, 7
          %v348 = vsub.s32 0, %v347
          %v349 = vrot.slane %v344, %v348
          %350 = vst [vmem:[%s216] sm:$0x1] %v349
        $region44: #{tpu_custom_call.1} parent=27 // pred_fallthru
          _
        %s351 = sand.u32 %s98, 1
        %s352 = scalar_lea.sflag [#allocation5], %s351
        %s353 = sand.u32 %s98, 1
        %s354 = scalar_lea.vmem [#allocation8], %s353
        // Predicated region
        $region45: #{tpu_custom_call.1} parent=27 // pred_check
          %p355 = pneg %p108
        $region46: #{tpu_custom_call.1} parent=27 // pred_check_branch
          %357 = sbr.rel (%p355) target = $region48
        $region47: #{tpu_custom_call.1} parent=27 // pred_region
          %s359 = ssub.s32 16, 16
          %360 = vsyncadd %s352, %s359
          %s361 = smul.addr %s26, 16
          %s362 = scalar_lea.hbm %s2, %s361
          %s364 = sshll.u32 %s354, 4
          %s365 = int_to_ptr.vmem [resolvable:$true] %s364
          %367 = dma.vmem_to_hbm [thread:$0]  %s365, 16, %s362, %s352
        $region48: #{tpu_custom_call.1} parent=27 // pred_fallthru
          _
      $region28: #{tpu_custom_call.1} parent=5 // pred_fallthru
        _
      %p368 = scmp.le.s32.totalorder 2, %s17
      // Predicated region
      $region49: #{tpu_custom_call.1} parent=5 // pred_check
        %p369 = pneg %p368
      $region50: #{tpu_custom_call.1} parent=5 // pred_check_branch
        %371 = sbr.rel (%p369) target = $region52
      $region51: #{tpu_custom_call.1} parent=5 // pred_region
        %s372 = ssub.s32 %s17, 2
        // Predicated region
        $region53: #{tpu_custom_call.1} parent=51 // pred_check
          %p373 = pneg %p114
        $region54: #{tpu_custom_call.1} parent=51 // pred_check_branch
          %375 = sbr.rel (%p373) target = $region56
        $region55: #{tpu_custom_call.1} parent=51 // pred_region
          %s376 = sand.u32 %s99, 1
          %s377 = scalar_lea.sflag [#allocation5], %s376
          %s378 = sand.u32 %s99, 1
          %s379 = scalar_lea.vmem [#allocation8], %s378
          %380 = dma.done %s377, 16
        $region56: #{tpu_custom_call.1} parent=51 // pred_fallthru
          _
      $region52: #{tpu_custom_call.1} parent=5 // pred_fallthru
        _
    $region6: #{tpu_custom_call.1} parent=1 // loop_footer
      %s21 = sadd.s32 1, %s17
    $region7: #{tpu_custom_call.1} parent=1 // loop_footer_branch
      %16 = sbr.rel target = $region3
    $region8: #{tpu_custom_call.1} parent=1 // loop_exit
      _
    %381 = vsyncpa [#allocation4], 1
    %s382 = scalar_lea.sflag [#allocation4], 1
    %383 = vsyncpa %s382, 1
    %384 = vsyncpa [#allocation7], 1
    %s385 = scalar_lea.sflag [#allocation7], 1
    %386 = vsyncpa %s385, 1
    %387 = vsyncpa [#allocation5], 1
    %s388 = scalar_lea.sflag [#allocation5], 1
    %389 = vsyncpa %s388, 1

</llo_original>
